<compile_context>
chip_gen: v7x
topology: tpu7x:2x2x1
jax: 0.10.0
libtpu: 0.0.40
codegen_flags: <defaults>
</compile_context>

<pallas_src>
import math

import jax
import jax.numpy as jnp
from jax.experimental import pallas as pl
from jax.experimental.pallas import tpu as pltpu


def _round_up(x, m):
    return (x + m - 1) // m * m


def _make_kernel(tile_b, tile_n):
    def kernel(x_ref, w_ref, s_inv_x_ref, inv_w_ref, delta_ref, label_ref, out_ref):
        j = pl.program_id(0)                       # out_features tile index
        i = pl.program_id(1)                       # batch tile index

        # x is held fully resident in VMEM (constant index_map); slice the current
        # batch tile out of it instead of re-streaming x once per out_features tile.
        row0 = pl.multiple_of(i * tile_b, tile_b)
        x = x_ref[pl.ds(row0, tile_b), :]          # (tile_b, K)

        # Plain (M,K)x(K,N) matmul on the MXU; W was transposed/padded once at
        # parameter-setup time, so no per-tile relayout is needed.
        raw = jnp.dot(x, w_ref[...], preferred_element_type=jnp.float32)  # (tile_b, tile_n)

        # Both L2 normalizations and the scale s folded into a rank-1 scaling:
        # scaled == s * cosine.
        scaled = raw * s_inv_x_ref[...] * inv_w_ref[...]

        # Margin: all nonlinear work was precomputed per row as
        # delta = s*(phi - cos) at the label column; only a select + add remains.
        labels_local = label_ref[...] - j * tile_n                         # (tile_b, 1)
        col_ids = jax.lax.broadcasted_iota(jnp.int32, (tile_b, tile_n), 1)
        one_hot = col_ids == labels_local

        out_ref[...] = jnp.where(one_hot, scaled + delta_ref[...],
                                 scaled).astype(out_ref.dtype)

    return kernel


def prepare_arcmargin_params(weight, *, s=30.0, m=0.5, easy_margin=False,
                             tile_n=512, compute_dtype=jnp.float32):
    """One-time parameter setup (kept OUT of the per-call hot path).

    Transposes/pads/casts W once and precomputes the per-class 1/||w||, so the
    per-call forward never touches the full weight matrix outside the kernel.
    """
    out_features, in_features = weight.shape
    tile_n = min(tile_n, _round_up(out_features, 128))
    n_pad = _round_up(out_features, tile_n)

    w_f32 = weight.astype(jnp.float32)
    inv_w_vec = 1.0 / jnp.maximum(
        jnp.sqrt(jnp.sum(w_f32 * w_f32, axis=1)), 1e-12)            # (out_features,)

    inv_w_row = inv_w_vec
    if n_pad != out_features:
        inv_w_row = jnp.pad(inv_w_row, (0, n_pad - out_features), constant_values=1.0)
    inv_w_row = inv_w_row.reshape(1, n_pad)

    w_t = w_f32.T                                                   # (K, out_features)
    if n_pad != out_features:
        w_t = jnp.pad(w_t, ((0, 0), (0, n_pad - out_features)))
    w_t = w_t.astype(compute_dtype)                                 # (K, N_p)

    return dict(
        weight=weight, w_t=w_t, inv_w_vec=inv_w_vec, inv_w_row=inv_w_row,
        s=float(s), easy_margin=bool(easy_margin),
        cos_m=math.cos(m), sin_m=math.sin(m),
        th=math.cos(math.pi - m), mm=math.sin(math.pi - m) * m,
        tile_n=tile_n, n_pad=n_pad,
        in_features=in_features, out_features=out_features,
        compute_dtype=compute_dtype,
    )


def arc_margin_product(params, x, label, *, tile_b=256, out_dtype=jnp.float32):
    """Forward pass matching ArcMarginProduct.forward(input, label)."""
    B, in_features = x.shape
    assert in_features == params["in_features"]
    out_features = params["out_features"]
    n_pad = params["n_pad"]
    tile_n = params["tile_n"]
    compute_dtype = params["compute_dtype"]
    s = params["s"]

    tile_b = min(tile_b, _round_up(B, 8))
    b_pad = _round_up(B, tile_b)

    # --- tiny per-row pre-pass (O(B*K) work; negligible vs. the W stream) ---
    x_f32 = x.astype(jnp.float32)
    inv_x = 1.0 / jnp.maximum(jnp.sqrt(jnp.sum(x_f32 * x_f32, axis=1)), 1e-12)  # (B,)
    label_i32 = label.astype(jnp.int32)
    w_rows = jnp.take(params["weight"].astype(jnp.float32), label_i32, axis=0)  # (B, K)
    inv_w_lab = jnp.take(params["inv_w_vec"], label_i32)                        # (B,)
    cos_lab = jnp.sum(x_f32 * w_rows, axis=1) * inv_x * inv_w_lab
    sine = jnp.sqrt(jnp.clip(1.0 - cos_lab * cos_lab, 0.0, 1.0))
    phi = cos_lab * params["cos_m"] - sine * params["sin_m"]
    if params["easy_margin"]:
        phi = jnp.where(cos_lab > 0.0, phi, cos_lab)
    else:
        phi = jnp.where(cos_lab > params["th"], phi, cos_lab - params["mm"])
    delta = s * (phi - cos_lab)                                                  # (B,)
    s_inv_x = s * inv_x                                                          # (B,)

    def _col(v, pad_value, dtype):
        v = v.astype(dtype).reshape(B, 1)
        if b_pad != B:
            v = jnp.pad(v, ((0, b_pad - B), (0, 0)), constant_values=pad_value)
        return v

    s_inv_x_col = _col(s_inv_x, 0.0, jnp.float32)
    delta_col = _col(delta, 0.0, jnp.float32)
    label_col = _col(label_i32, -1, jnp.int32)       # padded rows never match a column

    x_c = x if x.dtype == compute_dtype else x.astype(compute_dtype)
    if b_pad != B:
        x_c = jnp.pad(x_c, ((0, b_pad - B), (0, 0)))

    grid = (n_pad // tile_n, b_pad // tile_b)        # N outer, B inner: W streamed once

    kernel = _make_kernel(tile_b, tile_n)

    cbytes = jnp.dtype(compute_dtype).itemsize
    obytes = jnp.dtype(out_dtype).itemsize
    cost = pl.CostEstimate(
        flops=2 * b_pad * n_pad * in_features + 4 * b_pad * n_pad,
        transcendentals=0,
        bytes_accessed=(cbytes * (b_pad * in_features + in_features * n_pad)
                        + obytes * b_pad * n_pad + 4 * (n_pad + 3 * b_pad)),
    )

    # Double-buffered footprint: resident x + streamed W/out tiles (+1 MiB margin).
    est_vmem = (2 * b_pad * in_features * cbytes
                + 2 * in_features * tile_n * cbytes
                + 2 * tile_b * tile_n * obytes
                + (1 << 20))
    vmem_limit = int(min(max(est_vmem * 5 // 4, 32 << 20), 64 << 20))

    out_p = pl.pallas_call(
        kernel,
        out_shape=jax.ShapeDtypeStruct((b_pad, n_pad), out_dtype),
        grid=grid,
        in_specs=[
            pl.BlockSpec((b_pad, in_features), lambda j, i: (0, 0)),    # x: resident, DMA'd once
            pl.BlockSpec((in_features, tile_n), lambda j, i: (0, j)),   # W^T tile: streamed once
            pl.BlockSpec((tile_b, 1), lambda j, i: (i, 0)),             # s/||x|| column
            pl.BlockSpec((1, tile_n), lambda j, i: (0, j)),             # 1/||w|| row
            pl.BlockSpec((tile_b, 1), lambda j, i: (i, 0)),             # per-row margin delta
            pl.BlockSpec((tile_b, 1), lambda j, i: (i, 0)),             # labels
        ],
        out_specs=pl.BlockSpec((tile_b, tile_n), lambda j, i: (i, j)),
        compiler_params=pltpu.CompilerParams(
            # Only the out_features axis is megacore-shardable (v7x): each core
            # streams a disjoint half of W.  Batch stays "arbitrary".
            dimension_semantics=("parallel", "arbitrary"),
            vmem_limit_bytes=vmem_limit,
        ),
        cost_estimate=cost,
    )(x_c, params["w_t"], s_inv_x_col, params["inv_w_row"], delta_col, label_col)

    if b_pad != B or n_pad != out_features:
        out_p = out_p[:B, :out_features]
    return out_p


def _reference(x, weight, label, *, s=30.0, m=0.5, easy_margin=False):
    """Pure-JAX reference mirroring the PyTorch forward exactly."""
    cos_m, sin_m = math.cos(m), math.sin(m)
    th = math.cos(math.pi - m)
    mm = math.sin(math.pi - m) * m
    xn = x / jnp.maximum(jnp.linalg.norm(x, axis=1, keepdims=True), 1e-12)
    wn = weight / jnp.maximum(jnp.linalg.norm(weight, axis=1, keepdims=True), 1e-12)
    cosine = xn @ wn.T
    sine = jnp.sqrt(jnp.clip(1.0 - cosine ** 2, 0.0, 1.0))
    phi = cosine * cos_m - sine * sin_m
    if easy_margin:
        phi = jnp.where(cosine > 0, phi, cosine)
    else:
        phi = jnp.where(cosine > th, phi, cosine - mm)
    one_hot = jax.nn.one_hot(label, cosine.shape[1], dtype=cosine.dtype)
    return (one_hot * phi + (1.0 - one_hot) * cosine) * s


if __name__ == "__main__":
    # Small synthetic shapes consistent with the module.
    batch = 8
    in_features = 32
    out_features = 16

    key = jax.random.PRNGKey(0)
    kx, kw, kl = jax.random.split(key, 3)

    x = jax.random.normal(kx, (batch, in_features), dtype=jnp.float32)

    # Xavier-uniform init for weight (out_features, in_features)
    bound = math.sqrt(6.0 / (in_features + out_features))
    weight = jax.random.uniform(
        kw, (out_features, in_features), dtype=jnp.float32,
        minval=-bound, maxval=bound)

    label = jax.random.randint(kl, (batch,), 0, out_features, dtype=jnp.int32)

    # One-time parameter setup (pad/cast/transpose W, per-class 1/||w||).
    params = prepare_arcmargin_params(weight, s=30.0, m=0.5, easy_margin=False)

    out = arc_margin_product(params, x, label)
    out = jax.block_until_ready(out)

    ref = _reference(x, weight, label, s=30.0, m=0.5, easy_margin=False)
    assert out.shape == ref.shape
    assert jnp.allclose(out, ref, atol=1e-4, rtol=1e-4), "mismatch vs reference"

    # TODO(synk): the PyTorch forward's `print(output)` host-side side effect is omitted.
    print("KERNEL_OK")
</pallas_src>

<mosaic_0001>
module attributes {stable_mosaic.version = 11 : i64} {
  func.func @kernel(%arg0: i32, %arg1: i32, %arg2: memref<8x32xf32, #tpu.memory_space<vmem>>, %arg3: memref<32x128xf32, #tpu.memory_space<vmem>>, %arg4: memref<8x1xf32, #tpu.memory_space<vmem>>, %arg5: memref<1x128xf32, #tpu.memory_space<vmem>>, %arg6: memref<8x1xf32, #tpu.memory_space<vmem>>, %arg7: memref<8x1xi32, #tpu.memory_space<vmem>>, %arg8: memref<8x128xf32, #tpu.memory_space<vmem>>) attributes {dimension_semantics = [#tpu.dimension_semantics<parallel>, #tpu.dimension_semantics<arbitrary>], iteration_bounds = array<i64: 1, 1>, scalar_prefetch = 0 : i64, scratch_operands = 0 : i64, tpu.core_type = #tpu.core_type<tc>, window_params = [{pipeline_mode = #tpu.pipeline_mode<synchronous>, transform_indices = @transform_0, window_bounds = array<i64: 8, 32>}, {transform_indices = @transform_1, window_bounds = array<i64: 32, 128>}, {transform_indices = @transform_2, window_bounds = array<i64: 8, 1>}, {transform_indices = @transform_3, window_bounds = array<i64: 1, 128>}, {transform_indices = @transform_4, window_bounds = array<i64: 8, 1>}, {transform_indices = @transform_5, window_bounds = array<i64: 8, 1>}, {transform_indices = @transform_6, window_bounds = array<i64: 8, 128>}]} {
    %c8_i32 = arith.constant 8 : i32
    %0 = arith.muli %arg1, %c8_i32 : i32
    %1 = tpu.assume_multiple %0, 8 : i32
    %2 = arith.index_cast %1 : i32 to index
    %c0 = arith.constant 0 : index
    %3 = vector.load %arg2[%2, %c0] : memref<8x32xf32, #tpu.memory_space<vmem>>, vector<8x32xf32>
    %c0_0 = arith.constant 0 : index
    %c0_1 = arith.constant 0 : index
    %4 = vector.load %arg3[%c0_0, %c0_1] : memref<32x128xf32, #tpu.memory_space<vmem>>, vector<32x128xf32>
    %cst = arith.constant dense<0.000000e+00> : vector<8x128xf32>
    %5 = tpu.matmul %3, %4, %cst {dimension_numbers = #tpu.dot_dimension_numbers<[1], [0], [0], [1], [0, 0, 1, 1], [], []>} : vector<8x32xf32>, vector<32x128xf32>, vector<8x128xf32> -> vector<8x128xf32>
    %c0_2 = arith.constant 0 : index
    %c0_3 = arith.constant 0 : index
    %6 = vector.load %arg4[%c0_2, %c0_3] : memref<8x1xf32, #tpu.memory_space<vmem>>, vector<8x1xf32>
    %7 = vector.broadcast %6 : vector<8x1xf32> to vector<8x128xf32>
    %8 = arith.mulf %5, %7 : vector<8x128xf32>
    %c0_4 = arith.constant 0 : index
    %c0_5 = arith.constant 0 : index
    %9 = vector.load %arg5[%c0_4, %c0_5] : memref<1x128xf32, #tpu.memory_space<vmem>>, vector<1x128xf32>
    %10 = vector.broadcast %9 : vector<1x128xf32> to vector<8x128xf32>
    %11 = arith.mulf %8, %10 : vector<8x128xf32>
    %c0_6 = arith.constant 0 : index
    %c0_7 = arith.constant 0 : index
    %12 = vector.load %arg7[%c0_6, %c0_7] : memref<8x1xi32, #tpu.memory_space<vmem>>, vector<8x1xi32>
    %c128_i32 = arith.constant 128 : i32
    %13 = arith.muli %arg0, %c128_i32 : i32
    %14 = vector.broadcast %13 : i32 to vector<8x1xi32>
    %15 = arith.subi %12, %14 : vector<8x1xi32>
    %16 = tpu.iota {dimensions = array<i32: 1>} : vector<8x128xi32>
    %17 = vector.broadcast %15 : vector<8x1xi32> to vector<8x128xi32>
    %18 = arith.cmpi eq, %16, %17 : vector<8x128xi32>
    %c0_8 = arith.constant 0 : index
    %c0_9 = arith.constant 0 : index
    %19 = vector.load %arg6[%c0_8, %c0_9] : memref<8x1xf32, #tpu.memory_space<vmem>>, vector<8x1xf32>
    %20 = vector.broadcast %19 : vector<8x1xf32> to vector<8x128xf32>
    %21 = arith.addf %11, %20 : vector<8x128xf32>
    %22 = arith.select %18, %21, %11 : vector<8x128xi1>, vector<8x128xf32>
    %c0_10 = arith.constant 0 : index
    %c0_11 = arith.constant 0 : index
    %23 = vector.load %arg8[%c0_10, %c0_11] : memref<8x128xf32, #tpu.memory_space<vmem>>, vector<8x128xf32>
    tpu.vector_store %arg8[%c0_10, %c0_11], %22 {strides = array<i32>} : memref<8x128xf32, #tpu.memory_space<vmem>>, vector<8x128xf32>,
    return
  }
  func.func @transform_0(%arg0: i32, %arg1: i32) -> (i32, i32) {
    %c0_i32 = arith.constant 0 : i32
    %c0_i32_0 = arith.constant 0 : i32
    %c0_i32_1 = arith.constant 0 : i32
    return %c0_i32, %c0_i32_0 : i32, i32
  }
  func.func @transform_1(%arg0: i32, %arg1: i32) -> (i32, i32) {
    %c0_i32 = arith.constant 0 : i32
    %c0_i32_0 = arith.constant 0 : i32
    return %c0_i32, %arg0 : i32, i32
  }
  func.func @transform_2(%arg0: i32, %arg1: i32) -> (i32, i32) {
    %c0_i32 = arith.constant 0 : i32
    %c0_i32_0 = arith.constant 0 : i32
    return %arg1, %c0_i32 : i32, i32
  }
  func.func @transform_3(%arg0: i32, %arg1: i32) -> (i32, i32) {
    %c0_i32 = arith.constant 0 : i32
    %c0_i32_0 = arith.constant 0 : i32
    return %c0_i32, %arg0 : i32, i32
  }
  func.func @transform_4(%arg0: i32, %arg1: i32) -> (i32, i32) {
    %c0_i32 = arith.constant 0 : i32
    %c0_i32_0 = arith.constant 0 : i32
    return %arg1, %c0_i32 : i32, i32
  }
  func.func @transform_5(%arg0: i32, %arg1: i32) -> (i32, i32) {
    %c0_i32 = arith.constant 0 : i32
    %c0_i32_0 = arith.constant 0 : i32
    return %arg1, %c0_i32 : i32, i32
  }
  func.func @transform_6(%arg0: i32, %arg1: i32) -> (i32, i32) {
    %c0_i32 = arith.constant 0 : i32
    return %arg1, %arg0 : i32, i32
  }
}

</mosaic_0001>

<llo_original>
// kernel: tpu_custom_call.1
$region0: #{tpu_custom_call.1}
  #allocation0 [shape = 'u32[]', space=smem, size = 0x4, offset = 0x4, fixed_abs, tag = 'smem constant byte address 0x4 - core index']
  #allocation1 [shape = 'u32[144,128]{1,0:T(1,128)}', space=vmem, size = 0x12000, scoped, tag = 'internal scratch']
  %s0 = inlined_call_operand.vmem [shape: f32[8,32], index: 0, kind: input, shape index: {}]
  %s1 = inlined_call_operand.hbm [shape: f32[32,128], index: 1, kind: input, shape index: {}]
  %s2 = inlined_call_operand.vmem [shape: f32[8,1], index: 2, kind: input, shape index: {}]
  %s3 = inlined_call_operand.vmem [shape: f32[1,128], index: 3, kind: input, shape index: {}]
  %s4 = inlined_call_operand.vmem [shape: f32[8,1], index: 4, kind: input, shape index: {}]
  %s5 = inlined_call_operand.vmem [shape: s32[8,1], index: 5, kind: input, shape index: {}]
  %s6 = inlined_call_operand.hbm [shape: f32[8,128], index: 6, kind: output, shape index: {}]
  %s7 = sld [smem:[#allocation0]]
  $region38: #{tpu_custom_call.1} parent=0
    _
  %s9 = ssub.s32 1, %s7
  %s10 = scalar_select 0, %s9, %s7
  $region1: #{tpu_custom_call.1} parent=0
    #allocation2 [shape = 'u8[16384]{0}', space=vmem, size = 0x4000, scoped, tag = 'input window, operand 1, single buffered']
    #allocation3 [shape = 's32[1]{0}', space=sflag, size = 0x4, scoped, tag = 'scoped memory for tpu_custom_call.1']
    #allocation4 [shape = 's32[1]{0}', space=sflag, size = 0x4, scoped, tag = 'scoped memory for tpu_custom_call.1']
    #allocation5 [shape = 'u8[4096]{0}', space=vmem, size = 0x1000, scoped, tag = 'output window, operand 0, single buffered']
    %11 = vsyncpa [#allocation3], 0
    %12 = vsyncpa [#allocation4], 0
    // Predicated region
    $region2: #{tpu_custom_call.1} parent=1 // pred_check
      _
    $region3: #{tpu_custom_call.1} parent=1 // pred_check_branch
      %14 = sbr.rel (0) target = $region5
    $region4: #{tpu_custom_call.1} parent=1 // pred_region
      _
    $region5: #{tpu_custom_call.1} parent=1 // pred_fallthru
      _
    // Predicated region
    $region6: #{tpu_custom_call.1} parent=1 // pred_check
      _
    $region7: #{tpu_custom_call.1} parent=1 // pred_check_branch
      %16 = sbr.rel (0) target = $region9
    $region8: #{tpu_custom_call.1} parent=1 // pred_region
      %s18 = ssub.s32 512, 512
      %19 = vsyncadd [#allocation3], %s18
      %s20 = sshll.u32 [#allocation2], 4
      %s21 = int_to_ptr.vmem [resolvable:$true] %s20
      %26 = dma.hbm_to_vmem [thread:$0]  %s1, 512, %s21, [#allocation3], 128, 128, 8
    $region9: #{tpu_custom_call.1} parent=1 // pred_fallthru
      _
    // Predicated region
    $region10: #{tpu_custom_call.1} parent=1 // pred_check
      _
    $region11: #{tpu_custom_call.1} parent=1 // pred_check_branch
      %28 = sbr.rel (0) target = $region13
    $region12: #{tpu_custom_call.1} parent=1 // pred_region
      _
    $region13: #{tpu_custom_call.1} parent=1 // pred_fallthru
      _
    // Predicated region
    $region14: #{tpu_custom_call.1} parent=1 // pred_check
      _
    $region15: #{tpu_custom_call.1} parent=1 // pred_check_branch
      %30 = sbr.rel (0) target = $region17
    $region16: #{tpu_custom_call.1} parent=1 // pred_region
      _
    $region17: #{tpu_custom_call.1} parent=1 // pred_fallthru
      _
    // Predicated region
    $region18: #{tpu_custom_call.1} parent=1 // pred_check
      _
    $region19: #{tpu_custom_call.1} parent=1 // pred_check_branch
      %32 = sbr.rel (0) target = $region21
    $region20: #{tpu_custom_call.1} parent=1 // pred_region
      _
    $region21: #{tpu_custom_call.1} parent=1 // pred_fallthru
      _
    // Predicated region
    $region22: #{tpu_custom_call.1} parent=1 // pred_check
      _
    $region23: #{tpu_custom_call.1} parent=1 // pred_check_branch
      %34 = sbr.rel (0) target = $region25
    $region24: #{tpu_custom_call.1} parent=1 // pred_region
      _
    $region25: #{tpu_custom_call.1} parent=1 // pred_fallthru
      _
    // Predicated region
    $region26: #{tpu_custom_call.1} parent=1 // pred_check
      _
    $region27: #{tpu_custom_call.1} parent=1 // pred_check_branch
      %36 = sbr.rel (0) target = $region29
    $region28: #{tpu_custom_call.1} parent=1 // pred_region
      %37 = dma.done [#allocation3], 512
    $region29: #{tpu_custom_call.1} parent=1 // pred_fallthru
      _
    %s38 = smul.u32 0, 8
    %s39 = scalar_lea.vmem %s0, %s38
    %v40 = vld [vmem:[%s39] sm:$0xff]
    %v41 = vld [vmem:[#allocation2] sm:$0xff]
    %v42 = vld [vmem:[#allocation2 + $0x8] sm:$0xff]
    %v43 = vld [vmem:[#allocation2 + $0x10] sm:$0xff]
    %v44 = vld [vmem:[#allocation2 + $0x18] sm:$0xff]
    %vm45 = vcmask 261120
    %v47 = vsel %vm45, %v40, 0
    %49 = vmatprep.subr.mxu0 0.0
    %50 = vmatpush1.msra.mxu0 %v41
    %51 = vmatprep.subr.mxu0 0.0
    %52 = vmatpush1.msra.mxu0 %v42
    %53 = vmatprep.subr.mxu0 0.0
    %54 = vmatpush1.msra.mxu0 %v43
    %55 = vmatprep.subr.mxu0 0.0
    %56 = vmatpush1.msra.mxu0 %v44
    %57 = vmatprep.subr.mxu0 0.0
    %58 = vmatpush1.msra.mxu0 0.0
    %59 = vmatprep.subr.mxu0 0.0
    %60 = vmatpush1.msra.mxu0 0.0
    %61 = vmatprep.subr.mxu0 0.0
    %62 = vmatpush1.msra.mxu0 0.0
    %63 = vmatprep.subr.mxu0 0.0
    %64 = vmatpush1.msra.mxu0 0.0
    %65 = vmatprep.subr.mxu0 0.0
    %66 = vmatpush1.msra.mxu0 0.0
    %67 = vmatprep.subr.mxu0 0.0
    %68 = vmatpush1.msra.mxu0 0.0
    %69 = vmatprep.subr.mxu0 0.0
    %70 = vmatpush1.msra.mxu0 0.0
    %71 = vmatprep.subr.mxu0 0.0
    %72 = vmatpush1.msra.mxu0 0.0
    %73 = vmatprep.subr.mxu0 0.0
    %74 = vmatpush1.msra.mxu0 0.0
    %75 = vmatprep.subr.mxu0 0.0
    %76 = vmatpush1.msra.mxu0 0.0
    %77 = vmatprep.subr.mxu0 0.0
    %78 = vmatpush1.msra.mxu0 0.0
    %79 = vmatprep.subr.mxu0 0.0
    %80 = vmatpush1.msra.mxu0 0.0
    %81 = vmatprep.subr.mxu0 0.0
    %82 = vmatpush1.msra.mxu0 0.0
    %83 = vmatprep.subr.mxu0 0.0
    %84 = vmatpush1.msra.mxu0 0.0
    %85 = vmatprep.subr.mxu0 0.0
    %86 = vmatpush1.msra.mxu0 0.0
    %87 = vmatprep.subr.mxu0 0.0
    %88 = vmatpush1.msra.mxu0 0.0
    %89 = vmatprep.subr.mxu0 0.0
    %90 = vmatpush1.msra.mxu0 0.0
    %91 = vmatprep.subr.mxu0 0.0
    %92 = vmatpush1.msra.mxu0 0.0
    %93 = vmatprep.subr.mxu0 0.0
    %94 = vmatpush1.msra.mxu0 0.0
    %95 = vmatprep.subr.mxu0 0.0
    %96 = vmatpush1.msra.mxu0 0.0
    %97 = vmatprep.subr.mxu0 0.0
    %98 = vmatpush1.msra.mxu0 0.0
    %99 = vmatprep.subr.mxu0 0.0
    %100 = vmatpush1.msra.mxu0 0.0
    %101 = vmatprep.subr.mxu0 0.0
    %102 = vmatpush1.msra.mxu0 0.0
    %103 = vmatprep.subr.mxu0 0.0
    %104 = vmatpush1.msra.mxu0 0.0
    %105 = vmatprep.subr.mxu0 0.0
    %106 = vmatpush1.msra.mxu0 0.0
    %107 = vmatprep.subr.mxu0 0.0
    %108 = vmatpush1.msra.mxu0 0.0
    %109 = vmatprep.subr.mxu0 0.0
    %110 = vmatpush1.msra.mxu0 0.0
    %111 = vmatprep.subr.mxu0 0.0
    %112 = vmatpush1.msra.mxu0 0.0
    %113 = vmatprep.mubr.f32.mxu0 0.0
    %114 = vmatmul.mubr.f32.gmra.mrb[0].mxu0 %v47
    %v115 = vpop.f32.mrb[0].mxu0
    %v116 = vadd.f32 0.0, %v115
    %v117 = vpop.f32.mrb[0].mxu0
    %118 = vdwg.mxu0
    %v119 = vld [vmem:[%s2] sm:$0xff]
    %121 = vset.pattern.permute.xlu0 0
    %122 = vperm.xlu0 %121, %v119
    %v123 = vpop.permute.xlu0 %122
    %v125 = vmul.f32 %v116, %v123
    %v126 = vld [vmem:[%s3] sm:$0x1]
    %v128 = vlaneseq
    %v129 = vshrl.u32 %v128, 7
    %v130 = vsub.s32 0, %v129
    %v131 = vrot.slane %v126, %v130
    %v133 = vmul.f32 %v125, %v131
    %v134 = vld [vmem:[%s5] sm:$0xff]
    %s135 = smul.u32 0, 128
    %v136 = vstv %s135
    %v137 = vsub.s32 %v134, %v136
    %v138 = vlaneseq
    %v139 = vand.u32 %v138, 127
    %140 = vset.pattern.permute.xlu0 0
    %141 = vperm.xlu0 %140, %v137
    %v142 = vpop.permute.xlu0 %141
    %vm143 = vcmp.eq.s32.totalorder %v139, %v142
    %v144 = vld [vmem:[%s4] sm:$0xff]
    %146 = vset.pattern.permute.xlu0 0
    %147 = vperm.xlu0 %146, %v144
    %v148 = vpop.permute.xlu0 %147
    %v150 = vadd.f32 %v133, %v148
    %v151 = vsel %vm143, %v150, %v133
    %152 = vst [vmem:[#allocation5] sm:$0xff] %v151
    // Predicated region
    $region30: #{tpu_custom_call.1} parent=1 // pred_check
      _
    $region31: #{tpu_custom_call.1} parent=1 // pred_check_branch
      %154 = sbr.rel (0) target = $region33
    $region32: #{tpu_custom_call.1} parent=1 // pred_region
      %s156 = ssub.s32 128, 128
      %157 = vsyncadd [#allocation4], %s156
      %s159 = sshll.u32 [#allocation5], 4
      %s160 = int_to_ptr.vmem [resolvable:$true] %s159
      %162 = dma.vmem_to_hbm [thread:$0]  %s160, 128, %s6, [#allocation4]
    $region33: #{tpu_custom_call.1} parent=1 // pred_fallthru
      _
    // Predicated region
    $region34: #{tpu_custom_call.1} parent=1 // pred_check
      _
    $region35: #{tpu_custom_call.1} parent=1 // pred_check_branch
      %164 = sbr.rel (0) target = $region37
    $region36: #{tpu_custom_call.1} parent=1 // pred_region
      %165 = dma.done [#allocation4], 128
    $region37: #{tpu_custom_call.1} parent=1 // pred_fallthru
      _
    %166 = vsyncpa [#allocation3], 1
    %167 = vsyncpa [#allocation4], 1

</llo_original>
